<compile_context>
chip_gen: v7x
topology: tpu7x:2x2x1
jax: 0.10.0
libtpu: 0.0.40
codegen_flags: <defaults>
</compile_context>

<pallas_src>
import jax
import jax.numpy as jnp
from jax.experimental import pallas as pl
from jax.experimental.pallas import tpu as pltpu

_ISSUE_UNROLL = 8  # token tile is always a multiple of 8


def _embedding_gather_kernel(ids_ref, w_hbm, o_ref, sem):
    # ids_ref: (N_pad,) int32 token ids, scalar-prefetched into SMEM
    # w_hbm:   (V, H) embedding table, raw HBM ref (memory_space=pl.ANY)
    # o_ref:   (TN, H) output tile in VMEM (written only by the gather DMAs)
    # sem:     (1,) DMA semaphore shared by all row copies of this tile
    i = pl.program_id(0)
    tn = o_ref.shape[0]
    v = w_hbm.shape[0]
    base = i * tn

    # Issue one row-gather DMA per token of this tile.  The scalar loop is
    # manually unrolled by 8 (tn is always a multiple of 8) so descriptor
    # issue, not loop control, dominates the scalar-unit work.
    @pl.loop(0, tn, step=_ISSUE_UNROLL)
    def _(t0):
        for u in range(_ISSUE_UNROLL):
            t = t0 + u
            # Clamp into [0, V-1]: torch F.embedding raises on out-of-range
            # ids; a raw HBM gather would silently read an arbitrary row, so
            # clamping is the safe in-kernel choice.
            row = jnp.minimum(jnp.maximum(ids_ref[base + t], 0), v - 1)
            pltpu.make_async_copy(
                w_hbm.at[pl.ds(row, 1)], o_ref.at[pl.ds(t, 1)], sem.at[0]
            ).start()

    # DMA semaphores are byte-counted: all TN row copies signal the same
    # semaphore, so one wait sized to the full (TN, H) tile covers them all.
    # `.wait()` only uses the dst ref + semaphore, so a self descriptor never
    # touches the table and is valid for any vocab size.
    pltpu.make_async_copy(o_ref, o_ref, sem.at[0]).wait()


def _round_up(x, m):
    return (x + m - 1) // m * m


def embedding_forward(ids, weight, *, tile_bytes=2 << 20, max_tokens_per_tile=1024):
    """ids: int array of any shape, weight: (V, H) -> ids.shape + (H,)."""
    V, H = weight.shape
    idx_shape = ids.shape
    N = 1
    for d in idx_shape:
        N *= int(d)

    itemsize = jnp.dtype(weight.dtype).itemsize
    row_bytes = H * itemsize

    # Token tile: sublane-aligned (multiple of 8); sized so the two pipelined
    # (TN, H) output buffers stay well inside scoped VMEM on every generation
    # (v5e 16 MiB / v6e 32 MiB / v7x 32 MiB defaults), capped so per-step
    # scalar work (one DMA descriptor per token) stays bounded, and floored so
    # the fixed ~0.35 us per-grid-step cost amortizes.
    tn = max(tile_bytes // row_bytes, 8)
    tn = min(tn, max_tokens_per_tile)
    tn = _round_up(tn, 8)
    tn = min(tn, _round_up(N, 8))
    n_pad = _round_up(N, tn)

    ids_flat = ids.reshape(N).astype(jnp.int32)
    if n_pad != N:
        ids_flat = jnp.pad(ids_flat, (0, n_pad - N))  # padded rows gather row 0

    out_pad = pl.pallas_call(
        _embedding_gather_kernel,
        out_shape=jax.ShapeDtypeStruct((n_pad, H), weight.dtype),
        grid_spec=pltpu.PrefetchScalarGridSpec(
            num_scalar_prefetch=1,                         # ids land in SMEM
            grid=(n_pad // tn,),
            in_specs=[pl.BlockSpec(memory_space=pl.ANY)],  # table stays in HBM
            out_specs=pl.BlockSpec((tn, H), lambda i, ids: (i, 0)),
            scratch_shapes=[pltpu.SemaphoreType.DMA((1,))],
        ),
        compiler_params=pltpu.CompilerParams(
            # Token axis is embarrassingly parallel -> shards across the two
            # TensorCores on v7x; neutral on single-TC v5e/v6e.
            dimension_semantics=("parallel",),
        ),
        cost_estimate=pl.CostEstimate(
            flops=0,
            transcendentals=0,
            bytes_accessed=2 * n_pad * row_bytes + n_pad * 4,
        ),
    )(ids_flat, weight)

    return out_pad[:N].reshape(*idx_shape, H)


if __name__ == "__main__":
    key = jax.random.PRNGKey(0)
    k_w, k_i = jax.random.split(key)

    B, S = 2, 8          # batch, sequence
    V, H = 64, 32        # vocab (weight_shape[0]), hidden (weight_shape[1])

    # deterministic synthetic parameters (module only declares the shape)
    weight = jax.random.normal(k_w, (V, H), dtype=jnp.float32)
    ids = jax.random.randint(k_i, (B, S), 0, V, dtype=jnp.int32)

    out = embedding_forward(ids, weight)
    out = jax.block_until_ready(out)

    # correctness check against plain-JAX embedding (weight[ids]) -- exact
    ref = weight[ids]
    assert out.shape == (B, S, H), out.shape
    assert jnp.array_equal(out, ref), "mismatch vs reference gather"

    print("KERNEL_OK")
</pallas_src>

<mosaic_0001>
module attributes {stable_mosaic.version = 11 : i64} {
  func.func @_embedding_gather_kernel(%arg0: i32, %arg1: memref<16xi32, #tpu.memory_space<smem>>, %arg2: memref<64x32xf32, #tpu.memory_space<any>>, %arg3: memref<16x32xf32, #tpu.memory_space<vmem>>, %arg4: memref<1x!tpu.dma_semaphore, #tpu.memory_space<semaphore_mem>>) attributes {dimension_semantics = [#tpu.dimension_semantics<parallel>], iteration_bounds = array<i64: 1>, scalar_prefetch = 1 : i64, scratch_operands = 1 : i64, tpu.core_type = #tpu.core_type<tc>, window_params = [{}, {transform_indices = @transform_1, window_bounds = array<i64: 16, 32>}]} {
    %c16_i32 = arith.constant 16 : i32
    %0 = arith.muli %arg0, %c16_i32 : i32
    %c0_i32 = arith.constant 0 : i32
    %c2_i32 = arith.constant 2 : i32
    %1 = arith.addi %c0_i32, %c2_i32 : i32
    %c1_i32 = arith.constant 1 : i32
    scf.for %arg5 = %c0_i32 to %1 step %c1_i32  : i32 {
      %c8_i32 = arith.constant 8 : i32
      %4 = arith.muli %arg5, %c8_i32 : i32
      %c0_i32_2 = arith.constant 0 : i32
      %5 = arith.addi %c0_i32_2, %4 : i32
      %c0_i32_3 = arith.constant 0 : i32
      %6 = arith.addi %5, %c0_i32_3 : i32
      %7 = arith.addi %0, %6 : i32
      %8 = arith.index_cast %7 : i32 to index
      %9 = memref.load %arg1[%8] : memref<16xi32, #tpu.memory_space<smem>>
      %c0_i32_4 = arith.constant 0 : i32
      %10 = arith.maxsi %9, %c0_i32_4 : i32
      %c63_i32 = arith.constant 63 : i32
      %11 = arith.minsi %10, %c63_i32 : i32
      %c0_i32_5 = arith.constant 0 : i32
      %c0_i32_6 = arith.constant 0 : i32
      %12 = tpu.memref_slice %arg2[%11, %c0_i32_6] : memref<64x32xf32, #tpu.memory_space<any>> -> memref<1x32xf32, #tpu.memory_space<any>>
      %c0_i32_7 = arith.constant 0 : i32
      %13 = tpu.memref_slice %arg3[%6, %c0_i32_7] : memref<16x32xf32, #tpu.memory_space<vmem>> -> memref<1x32xf32, #tpu.memory_space<vmem>>
      %14 = tpu.memref_slice %arg4[%c0_i32_5] : memref<1x!tpu.dma_semaphore, #tpu.memory_space<semaphore_mem>> -> memref<1x!tpu.dma_semaphore, #tpu.memory_space<semaphore_mem>>
      %15 = tpu.memref_squeeze %14 : memref<1x!tpu.dma_semaphore, #tpu.memory_space<semaphore_mem>> -> memref<!tpu.dma_semaphore, #tpu.memory_space<semaphore_mem>>
      tpu.enqueue_dma source(%12 : memref<1x32xf32, #tpu.memory_space<any>>) target(%13 : memref<1x32xf32, #tpu.memory_space<vmem>>) target_semaphore(%15 : memref<!tpu.dma_semaphore, #tpu.memory_space<semaphore_mem>>)
      %c1_i32_8 = arith.constant 1 : i32
      %16 = arith.addi %5, %c1_i32_8 : i32
      %17 = arith.addi %0, %16 : i32
      %18 = arith.index_cast %17 : i32 to index
      %19 = memref.load %arg1[%18] : memref<16xi32, #tpu.memory_space<smem>>
      %c0_i32_9 = arith.constant 0 : i32
      %20 = arith.maxsi %19, %c0_i32_9 : i32
      %c63_i32_10 = arith.constant 63 : i32
      %21 = arith.minsi %20, %c63_i32_10 : i32
      %c0_i32_11 = arith.constant 0 : i32
      %c0_i32_12 = arith.constant 0 : i32
      %22 = tpu.memref_slice %arg2[%21, %c0_i32_12] : memref<64x32xf32, #tpu.memory_space<any>> -> memref<1x32xf32, #tpu.memory_space<any>>
      %c0_i32_13 = arith.constant 0 : i32
      %23 = tpu.memref_slice %arg3[%16, %c0_i32_13] : memref<16x32xf32, #tpu.memory_space<vmem>> -> memref<1x32xf32, #tpu.memory_space<vmem>>
      %24 = tpu.memref_slice %arg4[%c0_i32_11] : memref<1x!tpu.dma_semaphore, #tpu.memory_space<semaphore_mem>> -> memref<1x!tpu.dma_semaphore, #tpu.memory_space<semaphore_mem>>
      %25 = tpu.memref_squeeze %24 : memref<1x!tpu.dma_semaphore, #tpu.memory_space<semaphore_mem>> -> memref<!tpu.dma_semaphore, #tpu.memory_space<semaphore_mem>>
      tpu.enqueue_dma source(%22 : memref<1x32xf32, #tpu.memory_space<any>>) target(%23 : memref<1x32xf32, #tpu.memory_space<vmem>>) target_semaphore(%25 : memref<!tpu.dma_semaphore, #tpu.memory_space<semaphore_mem>>)
      %c2_i32_14 = arith.constant 2 : i32
      %26 = arith.addi %5, %c2_i32_14 : i32
      %27 = arith.addi %0, %26 : i32
      %28 = arith.index_cast %27 : i32 to index
      %29 = memref.load %arg1[%28] : memref<16xi32, #tpu.memory_space<smem>>
      %c0_i32_15 = arith.constant 0 : i32
      %30 = arith.maxsi %29, %c0_i32_15 : i32
      %c63_i32_16 = arith.constant 63 : i32
      %31 = arith.minsi %30, %c63_i32_16 : i32
      %c0_i32_17 = arith.constant 0 : i32
      %c0_i32_18 = arith.constant 0 : i32
      %32 = tpu.memref_slice %arg2[%31, %c0_i32_18] : memref<64x32xf32, #tpu.memory_space<any>> -> memref<1x32xf32, #tpu.memory_space<any>>
      %c0_i32_19 = arith.constant 0 : i32
      %33 = tpu.memref_slice %arg3[%26, %c0_i32_19] : memref<16x32xf32, #tpu.memory_space<vmem>> -> memref<1x32xf32, #tpu.memory_space<vmem>>
      %34 = tpu.memref_slice %arg4[%c0_i32_17] : memref<1x!tpu.dma_semaphore, #tpu.memory_space<semaphore_mem>> -> memref<1x!tpu.dma_semaphore, #tpu.memory_space<semaphore_mem>>
      %35 = tpu.memref_squeeze %34 : memref<1x!tpu.dma_semaphore, #tpu.memory_space<semaphore_mem>> -> memref<!tpu.dma_semaphore, #tpu.memory_space<semaphore_mem>>
      tpu.enqueue_dma source(%32 : memref<1x32xf32, #tpu.memory_space<any>>) target(%33 : memref<1x32xf32, #tpu.memory_space<vmem>>) target_semaphore(%35 : memref<!tpu.dma_semaphore, #tpu.memory_space<semaphore_mem>>)
      %c3_i32 = arith.constant 3 : i32
      %36 = arith.addi %5, %c3_i32 : i32
      %37 = arith.addi %0, %36 : i32
      %38 = arith.index_cast %37 : i32 to index
      %39 = memref.load %arg1[%38] : memref<16xi32, #tpu.memory_space<smem>>
      %c0_i32_20 = arith.constant 0 : i32
      %40 = arith.maxsi %39, %c0_i32_20 : i32
      %c63_i32_21 = arith.constant 63 : i32
      %41 = arith.minsi %40, %c63_i32_21 : i32
      %c0_i32_22 = arith.constant 0 : i32
      %c0_i32_23 = arith.constant 0 : i32
      %42 = tpu.memref_slice %arg2[%41, %c0_i32_23] : memref<64x32xf32, #tpu.memory_space<any>> -> memref<1x32xf32, #tpu.memory_space<any>>
      %c0_i32_24 = arith.constant 0 : i32
      %43 = tpu.memref_slice %arg3[%36, %c0_i32_24] : memref<16x32xf32, #tpu.memory_space<vmem>> -> memref<1x32xf32, #tpu.memory_space<vmem>>
      %44 = tpu.memref_slice %arg4[%c0_i32_22] : memref<1x!tpu.dma_semaphore, #tpu.memory_space<semaphore_mem>> -> memref<1x!tpu.dma_semaphore, #tpu.memory_space<semaphore_mem>>
      %45 = tpu.memref_squeeze %44 : memref<1x!tpu.dma_semaphore, #tpu.memory_space<semaphore_mem>> -> memref<!tpu.dma_semaphore, #tpu.memory_space<semaphore_mem>>
      tpu.enqueue_dma source(%42 : memref<1x32xf32, #tpu.memory_space<any>>) target(%43 : memref<1x32xf32, #tpu.memory_space<vmem>>) target_semaphore(%45 : memref<!tpu.dma_semaphore, #tpu.memory_space<semaphore_mem>>)
      %c4_i32 = arith.constant 4 : i32
      %46 = arith.addi %5, %c4_i32 : i32
      %47 = arith.addi %0, %46 : i32
      %48 = arith.index_cast %47 : i32 to index
      %49 = memref.load %arg1[%48] : memref<16xi32, #tpu.memory_space<smem>>
      %c0_i32_25 = arith.constant 0 : i32
      %50 = arith.maxsi %49, %c0_i32_25 : i32
      %c63_i32_26 = arith.constant 63 : i32
      %51 = arith.minsi %50, %c63_i32_26 : i32
      %c0_i32_27 = arith.constant 0 : i32
      %c0_i32_28 = arith.constant 0 : i32
      %52 = tpu.memref_slice %arg2[%51, %c0_i32_28] : memref<64x32xf32, #tpu.memory_space<any>> -> memref<1x32xf32, #tpu.memory_space<any>>
      %c0_i32_29 = arith.constant 0 : i32
      %53 = tpu.memref_slice %arg3[%46, %c0_i32_29] : memref<16x32xf32, #tpu.memory_space<vmem>> -> memref<1x32xf32, #tpu.memory_space<vmem>>
      %54 = tpu.memref_slice %arg4[%c0_i32_27] : memref<1x!tpu.dma_semaphore, #tpu.memory_space<semaphore_mem>> -> memref<1x!tpu.dma_semaphore, #tpu.memory_space<semaphore_mem>>
      %55 = tpu.memref_squeeze %54 : memref<1x!tpu.dma_semaphore, #tpu.memory_space<semaphore_mem>> -> memref<!tpu.dma_semaphore, #tpu.memory_space<semaphore_mem>>
      tpu.enqueue_dma source(%52 : memref<1x32xf32, #tpu.memory_space<any>>) target(%53 : memref<1x32xf32, #tpu.memory_space<vmem>>) target_semaphore(%55 : memref<!tpu.dma_semaphore, #tpu.memory_space<semaphore_mem>>)
      %c5_i32 = arith.constant 5 : i32
      %56 = arith.addi %5, %c5_i32 : i32
      %57 = arith.addi %0, %56 : i32
      %58 = arith.index_cast %57 : i32 to index
      %59 = memref.load %arg1[%58] : memref<16xi32, #tpu.memory_space<smem>>
      %c0_i32_30 = arith.constant 0 : i32
      %60 = arith.maxsi %59, %c0_i32_30 : i32
      %c63_i32_31 = arith.constant 63 : i32
      %61 = arith.minsi %60, %c63_i32_31 : i32
      %c0_i32_32 = arith.constant 0 : i32
      %c0_i32_33 = arith.constant 0 : i32
      %62 = tpu.memref_slice %arg2[%61, %c0_i32_33] : memref<64x32xf32, #tpu.memory_space<any>> -> memref<1x32xf32, #tpu.memory_space<any>>
      %c0_i32_34 = arith.constant 0 : i32
      %63 = tpu.memref_slice %arg3[%56, %c0_i32_34] : memref<16x32xf32, #tpu.memory_space<vmem>> -> memref<1x32xf32, #tpu.memory_space<vmem>>
      %64 = tpu.memref_slice %arg4[%c0_i32_32] : memref<1x!tpu.dma_semaphore, #tpu.memory_space<semaphore_mem>> -> memref<1x!tpu.dma_semaphore, #tpu.memory_space<semaphore_mem>>
      %65 = tpu.memref_squeeze %64 : memref<1x!tpu.dma_semaphore, #tpu.memory_space<semaphore_mem>> -> memref<!tpu.dma_semaphore, #tpu.memory_space<semaphore_mem>>
      tpu.enqueue_dma source(%62 : memref<1x32xf32, #tpu.memory_space<any>>) target(%63 : memref<1x32xf32, #tpu.memory_space<vmem>>) target_semaphore(%65 : memref<!tpu.dma_semaphore, #tpu.memory_space<semaphore_mem>>)
      %c6_i32 = arith.constant 6 : i32
      %66 = arith.addi %5, %c6_i32 : i32
      %67 = arith.addi %0, %66 : i32
      %68 = arith.index_cast %67 : i32 to index
      %69 = memref.load %arg1[%68] : memref<16xi32, #tpu.memory_space<smem>>
      %c0_i32_35 = arith.constant 0 : i32
      %70 = arith.maxsi %69, %c0_i32_35 : i32
      %c63_i32_36 = arith.constant 63 : i32
      %71 = arith.minsi %70, %c63_i32_36 : i32
      %c0_i32_37 = arith.constant 0 : i32
      %c0_i32_38 = arith.constant 0 : i32
      %72 = tpu.memref_slice %arg2[%71, %c0_i32_38] : memref<64x32xf32, #tpu.memory_space<any>> -> memref<1x32xf32, #tpu.memory_space<any>>
      %c0_i32_39 = arith.constant 0 : i32
      %73 = tpu.memref_slice %arg3[%66, %c0_i32_39] : memref<16x32xf32, #tpu.memory_space<vmem>> -> memref<1x32xf32, #tpu.memory_space<vmem>>
      %74 = tpu.memref_slice %arg4[%c0_i32_37] : memref<1x!tpu.dma_semaphore, #tpu.memory_space<semaphore_mem>> -> memref<1x!tpu.dma_semaphore, #tpu.memory_space<semaphore_mem>>
      %75 = tpu.memref_squeeze %74 : memref<1x!tpu.dma_semaphore, #tpu.memory_space<semaphore_mem>> -> memref<!tpu.dma_semaphore, #tpu.memory_space<semaphore_mem>>
      tpu.enqueue_dma source(%72 : memref<1x32xf32, #tpu.memory_space<any>>) target(%73 : memref<1x32xf32, #tpu.memory_space<vmem>>) target_semaphore(%75 : memref<!tpu.dma_semaphore, #tpu.memory_space<semaphore_mem>>)
      %c7_i32 = arith.constant 7 : i32
      %76 = arith.addi %5, %c7_i32 : i32
      %77 = arith.addi %0, %76 : i32
      %78 = arith.index_cast %77 : i32 to index
      %79 = memref.load %arg1[%78] : memref<16xi32, #tpu.memory_space<smem>>
      %c0_i32_40 = arith.constant 0 : i32
      %80 = arith.maxsi %79, %c0_i32_40 : i32
      %c63_i32_41 = arith.constant 63 : i32
      %81 = arith.minsi %80, %c63_i32_41 : i32
      %c0_i32_42 = arith.constant 0 : i32
      %c0_i32_43 = arith.constant 0 : i32
      %82 = tpu.memref_slice %arg2[%81, %c0_i32_43] : memref<64x32xf32, #tpu.memory_space<any>> -> memref<1x32xf32, #tpu.memory_space<any>>
      %c0_i32_44 = arith.constant 0 : i32
      %83 = tpu.memref_slice %arg3[%76, %c0_i32_44] : memref<16x32xf32, #tpu.memory_space<vmem>> -> memref<1x32xf32, #tpu.memory_space<vmem>>
      %84 = tpu.memref_slice %arg4[%c0_i32_42] : memref<1x!tpu.dma_semaphore, #tpu.memory_space<semaphore_mem>> -> memref<1x!tpu.dma_semaphore, #tpu.memory_space<semaphore_mem>>
      %85 = tpu.memref_squeeze %84 : memref<1x!tpu.dma_semaphore, #tpu.memory_space<semaphore_mem>> -> memref<!tpu.dma_semaphore, #tpu.memory_space<semaphore_mem>>
      tpu.enqueue_dma source(%82 : memref<1x32xf32, #tpu.memory_space<any>>) target(%83 : memref<1x32xf32, #tpu.memory_space<vmem>>) target_semaphore(%85 : memref<!tpu.dma_semaphore, #tpu.memory_space<semaphore_mem>>)
    }
    %c2_i32_0 = arith.constant 2 : i32
    %c0_i32_1 = arith.constant 0 : i32
    %2 = tpu.memref_slice %arg4[%c0_i32_1] : memref<1x!tpu.dma_semaphore, #tpu.memory_space<semaphore_mem>> -> memref<1x!tpu.dma_semaphore, #tpu.memory_space<semaphore_mem>>
    %3 = tpu.memref_squeeze %2 : memref<1x!tpu.dma_semaphore, #tpu.memory_space<semaphore_mem>> -> memref<!tpu.dma_semaphore, #tpu.memory_space<semaphore_mem>>
    tpu.wait_dma2 semaphore(%3 : memref<!tpu.dma_semaphore, #tpu.memory_space<semaphore_mem>>) src(%arg3 : memref<16x32xf32, #tpu.memory_space<vmem>>) dst(%arg3 : memref<16x32xf32, #tpu.memory_space<vmem>>)
    return
  }
  func.func @transform_1(%arg0: i32, %arg1: memref<16xi32, #tpu.memory_space<smem>>) -> (i32, i32) {
    %c0_i32 = arith.constant 0 : i32
    %c0_i32_0 = arith.constant 0 : i32
    return %arg0, %c0_i32 : i32, i32
  }
}

</mosaic_0001>

<llo_original>
// kernel: tpu_custom_call.1
$region0: #{tpu_custom_call.1}
  #allocation0 [shape = 'u32[]', space=smem, size = 0x4, offset = 0x4, fixed_abs, tag = 'smem constant byte address 0x4 - core index']
  #allocation1 [shape = 'u32[144,128]{1,0:T(1,128)}', space=vmem, size = 0x12000, scoped, tag = 'internal scratch']
  #allocation2 [shape = 's32[1]{0}', space=sflag, size = 0x4, scoped, tag = 'scratch operand']
  #allocation3 [shape = 's32[1]{0}', space=sflag, size = 0x4, scoped, tag = 'scoped memory for tpu_custom_call.1']
  #allocation4 [shape = 'u8[512]{0}', space=smem, size = 0x200, scoped, tag = 'prefetched SMEM operand 0']
  #allocation7 [shape = 's32[]', space=sflag, size = 0x4, offset = 0, fixed_abs, tag = 'sflag constant byte address 0x0 - dummy sync flag']
  #allocation8 [shape = 's32[]', space=sflag, size = 0x4, offset = 0, fixed_abs, tag = 'sflag constant byte address 0x0 - dummy sync flag']
  #allocation9 [shape = 's32[]', space=sflag, size = 0x4, offset = 0, fixed_abs, tag = 'sflag constant byte address 0x0 - dummy sync flag']
  #allocation10 [shape = 's32[]', space=sflag, size = 0x4, offset = 0, fixed_abs, tag = 'sflag constant byte address 0x0 - dummy sync flag']
  #allocation11 [shape = 's32[]', space=sflag, size = 0x4, offset = 0, fixed_abs, tag = 'sflag constant byte address 0x0 - dummy sync flag']
  #allocation12 [shape = 's32[]', space=sflag, size = 0x4, offset = 0, fixed_abs, tag = 'sflag constant byte address 0x0 - dummy sync flag']
  #allocation13 [shape = 's32[]', space=sflag, size = 0x4, offset = 0, fixed_abs, tag = 'sflag constant byte address 0x0 - dummy sync flag']
  #allocation14 [shape = 's32[]', space=sflag, size = 0x4, offset = 0, fixed_abs, tag = 'sflag constant byte address 0x0 - dummy sync flag']
  %s0 = inlined_call_operand.vmem [shape: s32[16], index: 0, kind: input, shape index: {}]
  %s1 = inlined_call_operand.vmem [shape: f32[64,32], index: 1, kind: input, shape index: {}]
  %s2 = inlined_call_operand.hbm [shape: f32[16,32], index: 2, kind: output, shape index: {}]
  %s3 = sld [smem:[#allocation0]]
  $region257: #{tpu_custom_call.1} parent=0
    _
  %s5 = ssub.s32 1, %s3
  %s6 = scalar_select 0, %s5, %s3
  %s7 = sshll.u32 %s0, 4
  %s8 = int_to_ptr.vmem [resolvable:$true] %s7
  %10 = dma.vmem_to_smem %s8, 16, [#allocation4], [#allocation3]
  %11 = dma.done [#allocation3], 16
  %12 = sfence
  $region1: #{tpu_custom_call.1} parent=0
    #allocation5 [shape = 'u8[8192]{0}', space=vmem, size = 0x2000, scoped, tag = 'output window, operand 0, single buffered']
    #allocation6 [shape = 's32[1]{0}', space=sflag, size = 0x4, scoped, tag = 'scoped memory for tpu_custom_call.1']
    %13 = vsyncpa [#allocation6], 0
    %s14 = smul.u32 0, 16
    loop: start=0, step=1, limit=2
    $region2: #{tpu_custom_call.1} parent=1 // loop_pre_header
      _
    $region3: #{tpu_custom_call.1} parent=1 // loop_header
      %s16 = sphi 0, %s20
      %p17 = scmp.ge.s32.totalorder %s16, 2
    $region4: #{tpu_custom_call.1} parent=1 // loop_header_branch
      %19 = sbr.rel (%p17) target = $region8
    $region5: #{tpu_custom_call.1} parent=1 // loop_body
      %s21 = smul.u32 %s16, 8
      %s22 = sadd.s32 %s14, %s21
      %s23 = sld [smem:[#allocation4 + %s22]]
      %p24 = scmp.gt.s32.totalorder %s23, 0
      %s25 = scalar_select %p24, %s23, 0
      %p26 = scmp.lt.s32.totalorder %s25, 63
      %s27 = scalar_select %p26, %s25, 63
      %s28 = scalar_lea.vmem %s1, %s27
      %s29 = scalar_lea.vmem [#allocation5], %s21
      %p31 = scmp.lt.u32.totalorder 1, 8
      %p32 = pneg %p31
      // Predicated region
      $region9: #{tpu_custom_call.1} parent=5 // pred_check
        _
      $region10: #{tpu_custom_call.1} parent=5 // pred_check_branch
        %34 = sbr.rel (%p31) target = $region12
      $region11: #{tpu_custom_call.1} parent=5 // pred_region
        %s49 = sand.u32 1, 7
        %p50 = scmp.eq.s32.totalorder %s49, 0
        %p51 = pneg %p50
        // Predicated region
        $region24: #{tpu_custom_call.1} parent=11 // pred_check
          _
        $region25: #{tpu_custom_call.1} parent=11 // pred_check_branch
          %53 = sbr.rel (%p50) target = $region27
        $region26: #{tpu_custom_call.1} parent=11 // pred_region
          %s54 = sand.u32 1, 7
          %s55 = ssub.s32 1, %s54
          %s56 = scalar_lea.vmem %s28, %s55
          %s57 = ssub.s32 1, %s54
          %s58 = scalar_lea.vmem %s29, %s57 [#allocation5]
          %s59 = sshllo.u32 0, %s54
          loop: start=0, step=1, limit=1
          $region28: #{tpu_custom_call.1} parent=26 // loop_pre_header
            _
          $region29: #{tpu_custom_call.1} parent=26 // loop_header
            %s61 = sphi 0, %s65
            %p62 = scmp.ge.s32.totalorder %s61, 1
            %s66 = sphi %s56, %s56
            %s67 = sphi %s58, %s58
          $region30: #{tpu_custom_call.1} parent=26 // loop_header_branch
            %64 = sbr.rel (%p62) target = $region34
          $region31: #{tpu_custom_call.1} parent=26 // loop_body
            %v68 = vld [vmem:[%s66] sm:%s59]
            %69 = vst [vmem:[%s67] sm:%s59] %v68
          $region32: #{tpu_custom_call.1} parent=26 // loop_footer
            %s65 = sadd.s32 1, %s61
          $region33: #{tpu_custom_call.1} parent=26 // loop_footer_branch
            %60 = sbr.rel target = $region29
          $region34: #{tpu_custom_call.1} parent=26 // loop_exit
            _
        $region27: #{tpu_custom_call.1} parent=11 // pred_fallthru
          _
      $region12: #{tpu_custom_call.1} parent=5 // pred_fallthru
        _
      // Predicated region
      $region13: #{tpu_custom_call.1} parent=5 // pred_check
        %p35 = pneg %p31
      $region14: #{tpu_custom_call.1} parent=5 // pred_check_branch
        %37 = sbr.rel (%p35) target = $region16
      $region15: #{tpu_custom_call.1} parent=5 // pred_region
        %s38 = sshllo.u32 0, 1
        loop: start=0, step=1, limit=1
        $region17: #{tpu_custom_call.1} parent=15 // loop_pre_header
          _
        $region18: #{tpu_custom_call.1} parent=15 // loop_header
          %s40 = sphi 0, %s44
          %p41 = scmp.ge.s32.totalorder %s40, 1
          %s45 = sphi %s28, %s28
          %s46 = sphi %s29, %s29
        $region19: #{tpu_custom_call.1} parent=15 // loop_header_branch
          %43 = sbr.rel (%p41) target = $region23
        $region20: #{tpu_custom_call.1} parent=15 // loop_body
          %v47 = vld [vmem:[%s45] sm:%s38]
          %48 = vst [vmem:[%s46] sm:%s38] %v47
        $region21: #{tpu_custom_call.1} parent=15 // loop_footer
          %s44 = sadd.s32 1, %s40
        $region22: #{tpu_custom_call.1} parent=15 // loop_footer_branch
          %39 = sbr.rel target = $region18
        $region23: #{tpu_custom_call.1} parent=15 // loop_exit
          _
      $region16: #{tpu_custom_call.1} parent=5 // pred_fallthru
        _
      // Predicated region
      $region35: #{tpu_custom_call.1} parent=5 // pred_check
        _
      $region36: #{tpu_custom_call.1} parent=5 // pred_check_branch
        %72 = sbr.rel (0) target = $region38
      $region37: #{tpu_custom_call.1} parent=5 // pred_region
        %73 = vsyncadd [#allocation2], 16
      $region38: #{tpu_custom_call.1} parent=5 // pred_fallthru
        _
      %s74 = sadd.s32 %s21, 1
      %s75 = sadd.s32 %s14, %s74
      %s76 = sld [smem:[#allocation4 + %s75]]
      %p77 = scmp.gt.s32.totalorder %s76, 0
      %s78 = scalar_select %p77, %s76, 0
      %p79 = scmp.lt.s32.totalorder %s78, 63
      %s80 = scalar_select %p79, %s78, 63
      %s81 = scalar_lea.vmem %s1, %s80
      %s82 = scalar_lea.vmem [#allocation5], %s74
      %p84 = scmp.lt.u32.totalorder 1, 8
      %p85 = pneg %p84
      // Predicated region
      $region39: #{tpu_custom_call.1} parent=5 // pred_check
        _
      $region40: #{tpu_custom_call.1} parent=5 // pred_check_branch
        %87 = sbr.rel (%p84) target = $region42
      $region41: #{tpu_custom_call.1} parent=5 // pred_region
        %s102 = sand.u32 1, 7
        %p103 = scmp.eq.s32.totalorder %s102, 0
        %p104 = pneg %p103
        // Predicated region
        $region54: #{tpu_custom_call.1} parent=41 // pred_check
          _
        $region55: #{tpu_custom_call.1} parent=41 // pred_check_branch
          %106 = sbr.rel (%p103) target = $region57
        $region56: #{tpu_custom_call.1} parent=41 // pred_region
          %s107 = sand.u32 1, 7
          %s108 = ssub.s32 1, %s107
          %s109 = scalar_lea.vmem %s81, %s108
          %s110 = ssub.s32 1, %s107
          %s111 = scalar_lea.vmem %s82, %s110 [#allocation5]
          %s112 = sshllo.u32 0, %s107
          loop: start=0, step=1, limit=1
          $region58: #{tpu_custom_call.1} parent=56 // loop_pre_header
            _
          $region59: #{tpu_custom_call.1} parent=56 // loop_header
            %s114 = sphi 0, %s118
            %p115 = scmp.ge.s32.totalorder %s114, 1
            %s119 = sphi %s109, %s109
            %s120 = sphi %s111, %s111
          $region60: #{tpu_custom_call.1} parent=56 // loop_header_branch
            %117 = sbr.rel (%p115) target = $region64
          $region61: #{tpu_custom_call.1} parent=56 // loop_body
            %v121 = vld [vmem:[%s119] sm:%s112]
            %122 = vst [vmem:[%s120] sm:%s112] %v121
          $region62: #{tpu_custom_call.1} parent=56 // loop_footer
            %s118 = sadd.s32 1, %s114
          $region63: #{tpu_custom_call.1} parent=56 // loop_footer_branch
            %113 = sbr.rel target = $region59
          $region64: #{tpu_custom_call.1} parent=56 // loop_exit
            _
        $region57: #{tpu_custom_call.1} parent=41 // pred_fallthru
          _
      $region42: #{tpu_custom_call.1} parent=5 // pred_fallthru
        _
      // Predicated region
      $region43: #{tpu_custom_call.1} parent=5 // pred_check
        %p88 = pneg %p84
      $region44: #{tpu_custom_call.1} parent=5 // pred_check_branch
        %90 = sbr.rel (%p88) target = $region46
      $region45: #{tpu_custom_call.1} parent=5 // pred_region
        %s91 = sshllo.u32 0, 1
        loop: start=0, step=1, limit=1
        $region47: #{tpu_custom_call.1} parent=45 // loop_pre_header
          _
        $region48: #{tpu_custom_call.1} parent=45 // loop_header
          %s93 = sphi 0, %s97
          %p94 = scmp.ge.s32.totalorder %s93, 1
          %s98 = sphi %s81, %s81
          %s99 = sphi %s82, %s82
        $region49: #{tpu_custom_call.1} parent=45 // loop_header_branch
          %96 = sbr.rel (%p94) target = $region53
        $region50: #{tpu_custom_call.1} parent=45 // loop_body
          %v100 = vld [vmem:[%s98] sm:%s91]
          %101 = vst [vmem:[%s99] sm:%s91] %v100
        $region51: #{tpu_custom_call.1} parent=45 // loop_footer
          %s97 = sadd.s32 1, %s93
        $region52: #{tpu_custom_call.1} parent=45 // loop_footer_branch
          %92 = sbr.rel target = $region48
        $region53: #{tpu_custom_call.1} parent=45 // loop_exit
          _
      $region46: #{tpu_custom_call.1} parent=5 // pred_fallthru
        _
      // Predicated region
      $region65: #{tpu_custom_call.1} parent=5 // pred_check
        _
      $region66: #{tpu_custom_call.1} parent=5 // pred_check_branch
        %125 = sbr.rel (0) target = $region68
      $region67: #{tpu_custom_call.1} parent=5 // pred_region
        %126 = vsyncadd [#allocation2], 16
      $region68: #{tpu_custom_call.1} parent=5 // pred_fallthru
        _
      %s127 = sadd.s32 %s21, 2
      %s128 = sadd.s32 %s14, %s127
      %s129 = sld [smem:[#allocation4 + %s128]]
      %p130 = scmp.gt.s32.totalorder %s129, 0
      %s131 = scalar_select %p130, %s129, 0
      %p132 = scmp.lt.s32.totalorder %s131, 63
      %s133 = scalar_select %p132, %s131, 63
      %s134 = scalar_lea.vmem %s1, %s133
      %s135 = scalar_lea.vmem [#allocation5], %s127
      %p137 = scmp.lt.u32.totalorder 1, 8
      %p138 = pneg %p137
      // Predicated region
      $region69: #{tpu_custom_call.1} parent=5 // pred_check
        _
      $region70: #{tpu_custom_call.1} parent=5 // pred_check_branch
        %140 = sbr.rel (%p137) target = $region72
      $region71: #{tpu_custom_call.1} parent=5 // pred_region
        %s155 = sand.u32 1, 7
        %p156 = scmp.eq.s32.totalorder %s155, 0
        %p157 = pneg %p156
        // Predicated region
        $region84: #{tpu_custom_call.1} parent=71 // pred_check
          _
        $region85: #{tpu_custom_call.1} parent=71 // pred_check_branch
          %159 = sbr.rel (%p156) target = $region87
        $region86: #{tpu_custom_call.1} parent=71 // pred_region
          %s160 = sand.u32 1, 7
          %s161 = ssub.s32 1, %s160
          %s162 = scalar_lea.vmem %s134, %s161
          %s163 = ssub.s32 1, %s160
          %s164 = scalar_lea.vmem %s135, %s163 [#allocation5]
          %s165 = sshllo.u32 0, %s160
          loop: start=0, step=1, limit=1
          $region88: #{tpu_custom_call.1} parent=86 // loop_pre_header
            _
          $region89: #{tpu_custom_call.1} parent=86 // loop_header
            %s167 = sphi 0, %s171
            %p168 = scmp.ge.s32.totalorder %s167, 1
            %s172 = sphi %s162, %s162
            %s173 = sphi %s164, %s164
          $region90: #{tpu_custom_call.1} parent=86 // loop_header_branch
            %170 = sbr.rel (%p168) target = $region94
          $region91: #{tpu_custom_call.1} parent=86 // loop_body
            %v174 = vld [vmem:[%s172] sm:%s165]
            %175 = vst [vmem:[%s173] sm:%s165] %v174
          $region92: #{tpu_custom_call.1} parent=86 // loop_footer
            %s171 = sadd.s32 1, %s167
          $region93: #{tpu_custom_call.1} parent=86 // loop_footer_branch
            %166 = sbr.rel target = $region89
          $region94: #{tpu_custom_call.1} parent=86 // loop_exit
            _
        $region87: #{tpu_custom_call.1} parent=71 // pred_fallthru
          _
      $region72: #{tpu_custom_call.1} parent=5 // pred_fallthru
        _
      // Predicated region
      $region73: #{tpu_custom_call.1} parent=5 // pred_check
        %p141 = pneg %p137
      $region74: #{tpu_custom_call.1} parent=5 // pred_check_branch
        %143 = sbr.rel (%p141) target = $region76
      $region75: #{tpu_custom_call.1} parent=5 // pred_region
        %s144 = sshllo.u32 0, 1
        loop: start=0, step=1, limit=1
        $region77: #{tpu_custom_call.1} parent=75 // loop_pre_header
          _
        $region78: #{tpu_custom_call.1} parent=75 // loop_header
          %s146 = sphi 0, %s150
          %p147 = scmp.ge.s32.totalorder %s146, 1
          %s151 = sphi %s134, %s134
          %s152 = sphi %s135, %s135
        $region79: #{tpu_custom_call.1} parent=75 // loop_header_branch
          %149 = sbr.rel (%p147) target = $region83
        $region80: #{tpu_custom_call.1} parent=75 // loop_body
          %v153 = vld [vmem:[%s151] sm:%s144]
          %154 = vst [vmem:[%s152] sm:%s144] %v153
        $region81: #{tpu_custom_call.1} parent=75 // loop_footer
          %s150 = sadd.s32 1, %s146
        $region82: #{tpu_custom_call.1} parent=75 // loop_footer_branch
          %145 = sbr.rel target = $region78
        $region83: #{tpu_custom_call.1} parent=75 // loop_exit
          _
      $region76: #{tpu_custom_call.1} parent=5 // pred_fallthru
        _
      // Predicated region
      $region95: #{tpu_custom_call.1} parent=5 // pred_check
        _
      $region96: #{tpu_custom_call.1} parent=5 // pred_check_branch
        %178 = sbr.rel (0) target = $region98
      $region97: #{tpu_custom_call.1} parent=5 // pred_region
        %179 = vsyncadd [#allocation2], 16
      $region98: #{tpu_custom_call.1} parent=5 // pred_fallthru
        _
      %s180 = sadd.s32 %s21, 3
      %s181 = sadd.s32 %s14, %s180
      %s182 = sld [smem:[#allocation4 + %s181]]
      %p183 = scmp.gt.s32.totalorder %s182, 0
      %s184 = scalar_select %p183, %s182, 0
      %p185 = scmp.lt.s32.totalorder %s184, 63
      %s186 = scalar_select %p185, %s184, 63
      %s187 = scalar_lea.vmem %s1, %s186
      %s188 = scalar_lea.vmem [#allocation5], %s180
      %p190 = scmp.lt.u32.totalorder 1, 8
      %p191 = pneg %p190
      // Predicated region
      $region99: #{tpu_custom_call.1} parent=5 // pred_check
        _
      $region100: #{tpu_custom_call.1} parent=5 // pred_check_branch
        %193 = sbr.rel (%p190) target = $region102
      $region101: #{tpu_custom_call.1} parent=5 // pred_region
        %s208 = sand.u32 1, 7
        %p209 = scmp.eq.s32.totalorder %s208, 0
        %p210 = pneg %p209
        // Predicated region
        $region114: #{tpu_custom_call.1} parent=101 // pred_check
          _
        $region115: #{tpu_custom_call.1} parent=101 // pred_check_branch
          %212 = sbr.rel (%p209) target = $region117
        $region116: #{tpu_custom_call.1} parent=101 // pred_region
          %s213 = sand.u32 1, 7
          %s214 = ssub.s32 1, %s213
          %s215 = scalar_lea.vmem %s187, %s214
          %s216 = ssub.s32 1, %s213
          %s217 = scalar_lea.vmem %s188, %s216 [#allocation5]
          %s218 = sshllo.u32 0, %s213
          loop: start=0, step=1, limit=1
          $region118: #{tpu_custom_call.1} parent=116 // loop_pre_header
            _
          $region119: #{tpu_custom_call.1} parent=116 // loop_header
            %s220 = sphi 0, %s224
            %p221 = scmp.ge.s32.totalorder %s220, 1
            %s225 = sphi %s215, %s215
            %s226 = sphi %s217, %s217
          $region120: #{tpu_custom_call.1} parent=116 // loop_header_branch
            %223 = sbr.rel (%p221) target = $region124
          $region121: #{tpu_custom_call.1} parent=116 // loop_body
            %v227 = vld [vmem:[%s225] sm:%s218]
            %228 = vst [vmem:[%s226] sm:%s218] %v227
          $region122: #{tpu_custom_call.1} parent=116 // loop_footer
            %s224 = sadd.s32 1, %s220
          $region123: #{tpu_custom_call.1} parent=116 // loop_footer_branch
            %219 = sbr.rel target = $region119
          $region124: #{tpu_custom_call.1} parent=116 // loop_exit
            _
        $region117: #{tpu_custom_call.1} parent=101 // pred_fallthru
          _
      $region102: #{tpu_custom_call.1} parent=5 // pred_fallthru
        _
      // Predicated region
      $region103: #{tpu_custom_call.1} parent=5 // pred_check
        %p194 = pneg %p190
      $region104: #{tpu_custom_call.1} parent=5 // pred_check_branch
        %196 = sbr.rel (%p194) target = $region106
      $region105: #{tpu_custom_call.1} parent=5 // pred_region
        %s197 = sshllo.u32 0, 1
        loop: start=0, step=1, limit=1
        $region107: #{tpu_custom_call.1} parent=105 // loop_pre_header
          _
        $region108: #{tpu_custom_call.1} parent=105 // loop_header
          %s199 = sphi 0, %s203
          %p200 = scmp.ge.s32.totalorder %s199, 1
          %s204 = sphi %s187, %s187
          %s205 = sphi %s188, %s188
        $region109: #{tpu_custom_call.1} parent=105 // loop_header_branch
          %202 = sbr.rel (%p200) target = $region113
        $region110: #{tpu_custom_call.1} parent=105 // loop_body
          %v206 = vld [vmem:[%s204] sm:%s197]
          %207 = vst [vmem:[%s205] sm:%s197] %v206
        $region111: #{tpu_custom_call.1} parent=105 // loop_footer
          %s203 = sadd.s32 1, %s199
        $region112: #{tpu_custom_call.1} parent=105 // loop_footer_branch
          %198 = sbr.rel target = $region108
        $region113: #{tpu_custom_call.1} parent=105 // loop_exit
          _
      $region106: #{tpu_custom_call.1} parent=5 // pred_fallthru
        _
      // Predicated region
      $region125: #{tpu_custom_call.1} parent=5 // pred_check
        _
      $region126: #{tpu_custom_call.1} parent=5 // pred_check_branch
        %231 = sbr.rel (0) target = $region128
      $region127: #{tpu_custom_call.1} parent=5 // pred_region
        %232 = vsyncadd [#allocation2], 16
      $region128: #{tpu_custom_call.1} parent=5 // pred_fallthru
        _
      %s233 = sadd.s32 %s21, 4
      %s234 = sadd.s32 %s14, %s233
      %s235 = sld [smem:[#allocation4 + %s234]]
      %p236 = scmp.gt.s32.totalorder %s235, 0
      %s237 = scalar_select %p236, %s235, 0
      %p238 = scmp.lt.s32.totalorder %s237, 63
      %s239 = scalar_select %p238, %s237, 63
      %s240 = scalar_lea.vmem %s1, %s239
      %s241 = scalar_lea.vmem [#allocation5], %s233
      %p243 = scmp.lt.u32.totalorder 1, 8
      %p244 = pneg %p243
      // Predicated region
      $region129: #{tpu_custom_call.1} parent=5 // pred_check
        _
      $region130: #{tpu_custom_call.1} parent=5 // pred_check_branch
        %246 = sbr.rel (%p243) target = $region132
      $region131: #{tpu_custom_call.1} parent=5 // pred_region
        %s261 = sand.u32 1, 7
        %p262 = scmp.eq.s32.totalorder %s261, 0
        %p263 = pneg %p262
        // Predicated region
        $region144: #{tpu_custom_call.1} parent=131 // pred_check
          _
        $region145: #{tpu_custom_call.1} parent=131 // pred_check_branch
          %265 = sbr.rel (%p262) target = $region147
        $region146: #{tpu_custom_call.1} parent=131 // pred_region
          %s266 = sand.u32 1, 7
          %s267 = ssub.s32 1, %s266
          %s268 = scalar_lea.vmem %s240, %s267
          %s269 = ssub.s32 1, %s266
          %s270 = scalar_lea.vmem %s241, %s269 [#allocation5]
          %s271 = sshllo.u32 0, %s266
          loop: start=0, step=1, limit=1
          $region148: #{tpu_custom_call.1} parent=146 // loop_pre_header
            _
          $region149: #{tpu_custom_call.1} parent=146 // loop_header
            %s273 = sphi 0, %s277
            %p274 = scmp.ge.s32.totalorder %s273, 1
            %s278 = sphi %s268, %s268
            %s279 = sphi %s270, %s270
          $region150: #{tpu_custom_call.1} parent=146 // loop_header_branch
            %276 = sbr.rel (%p274) target = $region154
          $region151: #{tpu_custom_call.1} parent=146 // loop_body
            %v280 = vld [vmem:[%s278] sm:%s271]
            %281 = vst [vmem:[%s279] sm:%s271] %v280
          $region152: #{tpu_custom_call.1} parent=146 // loop_footer
            %s277 = sadd.s32 1, %s273
          $region153: #{tpu_custom_call.1} parent=146 // loop_footer_branch
            %272 = sbr.rel target = $region149
          $region154: #{tpu_custom_call.1} parent=146 // loop_exit
            _
        $region147: #{tpu_custom_call.1} parent=131 // pred_fallthru
          _
      $region132: #{tpu_custom_call.1} parent=5 // pred_fallthru
        _
      // Predicated region
      $region133: #{tpu_custom_call.1} parent=5 // pred_check
        %p247 = pneg %p243
      $region134: #{tpu_custom_call.1} parent=5 // pred_check_branch
        %249 = sbr.rel (%p247) target = $region136
      $region135: #{tpu_custom_call.1} parent=5 // pred_region
        %s250 = sshllo.u32 0, 1
        loop: start=0, step=1, limit=1
        $region137: #{tpu_custom_call.1} parent=135 // loop_pre_header
          _
        $region138: #{tpu_custom_call.1} parent=135 // loop_header
          %s252 = sphi 0, %s256
          %p253 = scmp.ge.s32.totalorder %s252, 1
          %s257 = sphi %s240, %s240
          %s258 = sphi %s241, %s241
        $region139: #{tpu_custom_call.1} parent=135 // loop_header_branch
          %255 = sbr.rel (%p253) target = $region143
        $region140: #{tpu_custom_call.1} parent=135 // loop_body
          %v259 = vld [vmem:[%s257] sm:%s250]
          %260 = vst [vmem:[%s258] sm:%s250] %v259
        $region141: #{tpu_custom_call.1} parent=135 // loop_footer
          %s256 = sadd.s32 1, %s252
        $region142: #{tpu_custom_call.1} parent=135 // loop_footer_branch
          %251 = sbr.rel target = $region138
        $region143: #{tpu_custom_call.1} parent=135 // loop_exit
          _
      $region136: #{tpu_custom_call.1} parent=5 // pred_fallthru
        _
      // Predicated region
      $region155: #{tpu_custom_call.1} parent=5 // pred_check
        _
      $region156: #{tpu_custom_call.1} parent=5 // pred_check_branch
        %284 = sbr.rel (0) target = $region158
      $region157: #{tpu_custom_call.1} parent=5 // pred_region
        %285 = vsyncadd [#allocation2], 16
      $region158: #{tpu_custom_call.1} parent=5 // pred_fallthru
        _
      %s286 = sadd.s32 %s21, 5
      %s287 = sadd.s32 %s14, %s286
      %s288 = sld [smem:[#allocation4 + %s287]]
      %p289 = scmp.gt.s32.totalorder %s288, 0
      %s290 = scalar_select %p289, %s288, 0
      %p291 = scmp.lt.s32.totalorder %s290, 63
      %s292 = scalar_select %p291, %s290, 63
      %s293 = scalar_lea.vmem %s1, %s292
      %s294 = scalar_lea.vmem [#allocation5], %s286
      %p296 = scmp.lt.u32.totalorder 1, 8
      %p297 = pneg %p296
      // Predicated region
      $region159: #{tpu_custom_call.1} parent=5 // pred_check
        _
      $region160: #{tpu_custom_call.1} parent=5 // pred_check_branch
        %299 = sbr.rel (%p296) target = $region162
      $region161: #{tpu_custom_call.1} parent=5 // pred_region
        %s314 = sand.u32 1, 7
        %p315 = scmp.eq.s32.totalorder %s314, 0
        %p316 = pneg %p315
        // Predicated region
        $region174: #{tpu_custom_call.1} parent=161 // pred_check
          _
        $region175: #{tpu_custom_call.1} parent=161 // pred_check_branch
          %318 = sbr.rel (%p315) target = $region177
        $region176: #{tpu_custom_call.1} parent=161 // pred_region
          %s319 = sand.u32 1, 7
          %s320 = ssub.s32 1, %s319
          %s321 = scalar_lea.vmem %s293, %s320
          %s322 = ssub.s32 1, %s319
          %s323 = scalar_lea.vmem %s294, %s322 [#allocation5]
          %s324 = sshllo.u32 0, %s319
          loop: start=0, step=1, limit=1
          $region178: #{tpu_custom_call.1} parent=176 // loop_pre_header
            _
          $region179: #{tpu_custom_call.1} parent=176 // loop_header
            %s326 = sphi 0, %s330
            %p327 = scmp.ge.s32.totalorder %s326, 1
            %s331 = sphi %s321, %s321
            %s332 = sphi %s323, %s323
          $region180: #{tpu_custom_call.1} parent=176 // loop_header_branch
            %329 = sbr.rel (%p327) target = $region184
          $region181: #{tpu_custom_call.1} parent=176 // loop_body
            %v333 = vld [vmem:[%s331] sm:%s324]
            %334 = vst [vmem:[%s332] sm:%s324] %v333
          $region182: #{tpu_custom_call.1} parent=176 // loop_footer
            %s330 = sadd.s32 1, %s326
          $region183: #{tpu_custom_call.1} parent=176 // loop_footer_branch
            %325 = sbr.rel target = $region179
          $region184: #{tpu_custom_call.1} parent=176 // loop_exit
            _
        $region177: #{tpu_custom_call.1} parent=161 // pred_fallthru
          _
      $region162: #{tpu_custom_call.1} parent=5 // pred_fallthru
        _
      // Predicated region
      $region163: #{tpu_custom_call.1} parent=5 // pred_check
        %p300 = pneg %p296
      $region164: #{tpu_custom_call.1} parent=5 // pred_check_branch
        %302 = sbr.rel (%p300) target = $region166
      $region165: #{tpu_custom_call.1} parent=5 // pred_region
        %s303 = sshllo.u32 0, 1
        loop: start=0, step=1, limit=1
        $region167: #{tpu_custom_call.1} parent=165 // loop_pre_header
          _
        $region168: #{tpu_custom_call.1} parent=165 // loop_header
          %s305 = sphi 0, %s309
          %p306 = scmp.ge.s32.totalorder %s305, 1
          %s310 = sphi %s293, %s293
          %s311 = sphi %s294, %s294
        $region169: #{tpu_custom_call.1} parent=165 // loop_header_branch
          %308 = sbr.rel (%p306) target = $region173
        $region170: #{tpu_custom_call.1} parent=165 // loop_body
          %v312 = vld [vmem:[%s310] sm:%s303]
          %313 = vst [vmem:[%s311] sm:%s303] %v312
        $region171: #{tpu_custom_call.1} parent=165 // loop_footer
          %s309 = sadd.s32 1, %s305
        $region172: #{tpu_custom_call.1} parent=165 // loop_footer_branch
          %304 = sbr.rel target = $region168
        $region173: #{tpu_custom_call.1} parent=165 // loop_exit
          _
      $region166: #{tpu_custom_call.1} parent=5 // pred_fallthru
        _
      // Predicated region
      $region185: #{tpu_custom_call.1} parent=5 // pred_check
        _
      $region186: #{tpu_custom_call.1} parent=5 // pred_check_branch
        %337 = sbr.rel (0) target = $region188
      $region187: #{tpu_custom_call.1} parent=5 // pred_region
        %338 = vsyncadd [#allocation2], 16
      $region188: #{tpu_custom_call.1} parent=5 // pred_fallthru
        _
      %s339 = sadd.s32 %s21, 6
      %s340 = sadd.s32 %s14, %s339
      %s341 = sld [smem:[#allocation4 + %s340]]
      %p342 = scmp.gt.s32.totalorder %s341, 0
      %s343 = scalar_select %p342, %s341, 0
      %p344 = scmp.lt.s32.totalorder %s343, 63
      %s345 = scalar_select %p344, %s343, 63
      %s346 = scalar_lea.vmem %s1, %s345
      %s347 = scalar_lea.vmem [#allocation5], %s339
      %p349 = scmp.lt.u32.totalorder 1, 8
      %p350 = pneg %p349
      // Predicated region
      $region189: #{tpu_custom_call.1} parent=5 // pred_check
        _
      $region190: #{tpu_custom_call.1} parent=5 // pred_check_branch
        %352 = sbr.rel (%p349) target = $region192
      $region191: #{tpu_custom_call.1} parent=5 // pred_region
        %s367 = sand.u32 1, 7
        %p368 = scmp.eq.s32.totalorder %s367, 0
        %p369 = pneg %p368
        // Predicated region
        $region204: #{tpu_custom_call.1} parent=191 // pred_check
          _
        $region205: #{tpu_custom_call.1} parent=191 // pred_check_branch
          %371 = sbr.rel (%p368) target = $region207
        $region206: #{tpu_custom_call.1} parent=191 // pred_region
          %s372 = sand.u32 1, 7
          %s373 = ssub.s32 1, %s372
          %s374 = scalar_lea.vmem %s346, %s373
          %s375 = ssub.s32 1, %s372
          %s376 = scalar_lea.vmem %s347, %s375 [#allocation5]
          %s377 = sshllo.u32 0, %s372
          loop: start=0, step=1, limit=1
          $region208: #{tpu_custom_call.1} parent=206 // loop_pre_header
            _
          $region209: #{tpu_custom_call.1} parent=206 // loop_header
            %s379 = sphi 0, %s383
            %p380 = scmp.ge.s32.totalorder %s379, 1
            %s384 = sphi %s374, %s374
            %s385 = sphi %s376, %s376
          $region210: #{tpu_custom_call.1} parent=206 // loop_header_branch
            %382 = sbr.rel (%p380) target = $region214
          $region211: #{tpu_custom_call.1} parent=206 // loop_body
            %v386 = vld [vmem:[%s384] sm:%s377]
            %387 = vst [vmem:[%s385] sm:%s377] %v386
          $region212: #{tpu_custom_call.1} parent=206 // loop_footer
            %s383 = sadd.s32 1, %s379
          $region213: #{tpu_custom_call.1} parent=206 // loop_footer_branch
            %378 = sbr.rel target = $region209
          $region214: #{tpu_custom_call.1} parent=206 // loop_exit
            _
        $region207: #{tpu_custom_call.1} parent=191 // pred_fallthru
          _
      $region192: #{tpu_custom_call.1} parent=5 // pred_fallthru
        _
      // Predicated region
      $region193: #{tpu_custom_call.1} parent=5 // pred_check
        %p353 = pneg %p349
      $region194: #{tpu_custom_call.1} parent=5 // pred_check_branch
        %355 = sbr.rel (%p353) target = $region196
      $region195: #{tpu_custom_call.1} parent=5 // pred_region
        %s356 = sshllo.u32 0, 1
        loop: start=0, step=1, limit=1
        $region197: #{tpu_custom_call.1} parent=195 // loop_pre_header
          _
        $region198: #{tpu_custom_call.1} parent=195 // loop_header
          %s358 = sphi 0, %s362
          %p359 = scmp.ge.s32.totalorder %s358, 1
          %s363 = sphi %s346, %s346
          %s364 = sphi %s347, %s347
        $region199: #{tpu_custom_call.1} parent=195 // loop_header_branch
          %361 = sbr.rel (%p359) target = $region203
        $region200: #{tpu_custom_call.1} parent=195 // loop_body
          %v365 = vld [vmem:[%s363] sm:%s356]
          %366 = vst [vmem:[%s364] sm:%s356] %v365
        $region201: #{tpu_custom_call.1} parent=195 // loop_footer
          %s362 = sadd.s32 1, %s358
        $region202: #{tpu_custom_call.1} parent=195 // loop_footer_branch
          %357 = sbr.rel target = $region198
        $region203: #{tpu_custom_call.1} parent=195 // loop_exit
          _
      $region196: #{tpu_custom_call.1} parent=5 // pred_fallthru
        _
      // Predicated region
      $region215: #{tpu_custom_call.1} parent=5 // pred_check
        _
      $region216: #{tpu_custom_call.1} parent=5 // pred_check_branch
        %390 = sbr.rel (0) target = $region218
      $region217: #{tpu_custom_call.1} parent=5 // pred_region
        %391 = vsyncadd [#allocation2], 16
      $region218: #{tpu_custom_call.1} parent=5 // pred_fallthru
        _
      %s392 = sadd.s32 %s21, 7
      %s393 = sadd.s32 %s14, %s392
      %s394 = sld [smem:[#allocation4 + %s393]]
      %p395 = scmp.gt.s32.totalorder %s394, 0
      %s396 = scalar_select %p395, %s394, 0
      %p397 = scmp.lt.s32.totalorder %s396, 63
      %s398 = scalar_select %p397, %s396, 63
      %s399 = scalar_lea.vmem %s1, %s398
      %s400 = scalar_lea.vmem [#allocation5], %s392
      %p402 = scmp.lt.u32.totalorder 1, 8
      %p403 = pneg %p402
      // Predicated region
      $region219: #{tpu_custom_call.1} parent=5 // pred_check
        _
      $region220: #{tpu_custom_call.1} parent=5 // pred_check_branch
        %405 = sbr.rel (%p402) target = $region222
      $region221: #{tpu_custom_call.1} parent=5 // pred_region
        %s420 = sand.u32 1, 7
        %p421 = scmp.eq.s32.totalorder %s420, 0
        %p422 = pneg %p421
        // Predicated region
        $region234: #{tpu_custom_call.1} parent=221 // pred_check
          _
        $region235: #{tpu_custom_call.1} parent=221 // pred_check_branch
          %424 = sbr.rel (%p421) target = $region237
        $region236: #{tpu_custom_call.1} parent=221 // pred_region
          %s425 = sand.u32 1, 7
          %s426 = ssub.s32 1, %s425
          %s427 = scalar_lea.vmem %s399, %s426
          %s428 = ssub.s32 1, %s425
          %s429 = scalar_lea.vmem %s400, %s428 [#allocation5]
          %s430 = sshllo.u32 0, %s425
          loop: start=0, step=1, limit=1
          $region238: #{tpu_custom_call.1} parent=236 // loop_pre_header
            _
          $region239: #{tpu_custom_call.1} parent=236 // loop_header
            %s432 = sphi 0, %s436
            %p433 = scmp.ge.s32.totalorder %s432, 1
            %s437 = sphi %s427, %s427
            %s438 = sphi %s429, %s429
          $region240: #{tpu_custom_call.1} parent=236 // loop_header_branch
            %435 = sbr.rel (%p433) target = $region244
          $region241: #{tpu_custom_call.1} parent=236 // loop_body
            %v439 = vld [vmem:[%s437] sm:%s430]
            %440 = vst [vmem:[%s438] sm:%s430] %v439
          $region242: #{tpu_custom_call.1} parent=236 // loop_footer
            %s436 = sadd.s32 1, %s432
          $region243: #{tpu_custom_call.1} parent=236 // loop_footer_branch
            %431 = sbr.rel target = $region239
          $region244: #{tpu_custom_call.1} parent=236 // loop_exit
            _
        $region237: #{tpu_custom_call.1} parent=221 // pred_fallthru
          _
      $region222: #{tpu_custom_call.1} parent=5 // pred_fallthru
        _
      // Predicated region
      $region223: #{tpu_custom_call.1} parent=5 // pred_check
        %p406 = pneg %p402
      $region224: #{tpu_custom_call.1} parent=5 // pred_check_branch
        %408 = sbr.rel (%p406) target = $region226
      $region225: #{tpu_custom_call.1} parent=5 // pred_region
        %s409 = sshllo.u32 0, 1
        loop: start=0, step=1, limit=1
        $region227: #{tpu_custom_call.1} parent=225 // loop_pre_header
          _
        $region228: #{tpu_custom_call.1} parent=225 // loop_header
          %s411 = sphi 0, %s415
          %p412 = scmp.ge.s32.totalorder %s411, 1
          %s416 = sphi %s399, %s399
          %s417 = sphi %s400, %s400
        $region229: #{tpu_custom_call.1} parent=225 // loop_header_branch
          %414 = sbr.rel (%p412) target = $region233
        $region230: #{tpu_custom_call.1} parent=225 // loop_body
          %v418 = vld [vmem:[%s416] sm:%s409]
          %419 = vst [vmem:[%s417] sm:%s409] %v418
        $region231: #{tpu_custom_call.1} parent=225 // loop_footer
          %s415 = sadd.s32 1, %s411
        $region232: #{tpu_custom_call.1} parent=225 // loop_footer_branch
          %410 = sbr.rel target = $region228
        $region233: #{tpu_custom_call.1} parent=225 // loop_exit
          _
      $region226: #{tpu_custom_call.1} parent=5 // pred_fallthru
        _
      // Predicated region
      $region245: #{tpu_custom_call.1} parent=5 // pred_check
        _
      $region246: #{tpu_custom_call.1} parent=5 // pred_check_branch
        %443 = sbr.rel (0) target = $region248
      $region247: #{tpu_custom_call.1} parent=5 // pred_region
        %444 = vsyncadd [#allocation2], 16
      $region248: #{tpu_custom_call.1} parent=5 // pred_fallthru
        _
    $region6: #{tpu_custom_call.1} parent=1 // loop_footer
      %s20 = sadd.s32 1, %s16
    $region7: #{tpu_custom_call.1} parent=1 // loop_footer_branch
      %15 = sbr.rel target = $region3
    $region8: #{tpu_custom_call.1} parent=1 // loop_exit
      _
    %s445 = smul.u32 16, 1
    %s446 = sshll.u32 %s445, 4
    %447 = dma.done [#allocation2], %s446
    // Predicated region
    $region249: #{tpu_custom_call.1} parent=1 // pred_check
      _
    $region250: #{tpu_custom_call.1} parent=1 // pred_check_branch
      %449 = sbr.rel (0) target = $region252
    $region251: #{tpu_custom_call.1} parent=1 // pred_region
      %s451 = ssub.s32 256, 256
      %452 = vsyncadd [#allocation6], %s451
      %s453 = sshll.u32 [#allocation5], 4
      %s454 = int_to_ptr.vmem [resolvable:$true] %s453
      %459 = dma.vmem_to_hbm [thread:$0]  %s454, 256, %s2, [#allocation6], 128, 128, 8
    $region252: #{tpu_custom_call.1} parent=1 // pred_fallthru
      _
    // Predicated region
    $region253: #{tpu_custom_call.1} parent=1 // pred_check
      _
    $region254: #{tpu_custom_call.1} parent=1 // pred_check_branch
      %461 = sbr.rel (0) target = $region256
    $region255: #{tpu_custom_call.1} parent=1 // pred_region
      %462 = dma.done [#allocation6], 256
    $region256: #{tpu_custom_call.1} parent=1 // pred_fallthru
      _
    %463 = vsyncpa [#allocation6], 1
  %464 = vsyncmov [#allocation2]
  %s465 = vpop.sfrf %464
  %p466 = scmp.eq.s32.totalorder %s465, 0
  %p467 = pneg %p466
  %469 = shalt.err (%p467)

</llo_original>
